<compile_context>
chip_gen: v7x
topology: tpu7x:2x2x1
jax: 0.10.0
libtpu: 0.0.40
codegen_flags: <defaults>
</compile_context>

<pallas_src>
import numpy as np
import jax
import jax.numpy as jnp
from jax import lax
from jax.experimental import pallas as pl
from jax.experimental.pallas import tpu as pltpu

KSIZE = 7
PAD = (KSIZE - 1) // 2


def cbam_kernel(x_ref, w1_ref, b1_ref, w2_ref, b2_ref, kmat_ref, o_ref):
    # x_ref: (bt, C, H*W) lane-dense batch block; kmat_ref: (2*HW, HW) conv operator.
    x = x_ref[...].astype(jnp.float32)                      # (bt, C, HW)
    bt, C, HW = x.shape
    inv_hw = 1.0 / HW
    inv_c = 1.0 / C

    # ---------------- Channel attention ----------------
    avg_c = jnp.sum(x, axis=2, keepdims=True) * inv_hw       # (bt, C, 1)
    max_c = jnp.max(x, axis=2, keepdims=True)                # (bt, C, 1)
    v = jnp.concatenate([avg_c, max_c], axis=1)              # (bt, 2C, 1)  [avg ; max]

    # fc1: Linear(2C -> hidden).  w1: (1, 2C, hidden), b1: (1, 1, hidden).
    h = jnp.sum(v * w1_ref[...], axis=1, keepdims=True) + b1_ref[...]    # (bt, 1, hidden)
    h = jnp.maximum(h, 0.0)                                               # ReLU
    # fc2: Linear(hidden -> C).  w2: (1, C, hidden) (torch (out, in)), b2: (1, C, 1).
    ca = jnp.sum(w2_ref[...] * h, axis=2, keepdims=True) + b2_ref[...]    # (bt, C, 1)
    ca = 1.0 / (1.0 + jnp.exp(-ca))                                       # sigmoid

    xc = x * ca                                              # (bt, C, HW); x dead after this

    # ---------------- Spatial attention ----------------
    avg_s = jnp.sum(xc, axis=1, keepdims=True) * inv_c       # (bt, 1, HW)
    max_s = jnp.max(xc, axis=1, keepdims=True)               # (bt, 1, HW)
    s_cat = jnp.concatenate([avg_s, max_s], axis=2)          # (bt, 1, 2*HW) lane concat

    # Conv2d(2, 1, 7, padding=3, bias=False) == s_cat @ kmat on the MXU.
    kmat = kmat_ref[...]                                     # (2*HW, HW) f32
    rows = []
    for b in range(bt):                                      # static unroll; bt kept small
        cb = jnp.dot(s_cat[b], kmat, preferred_element_type=jnp.float32)  # (1, HW)
        rows.append(cb[None])                                # (1, 1, HW) leading expand
    conv = rows[0] if bt == 1 else jnp.concatenate(rows, axis=0)          # (bt, 1, HW)

    sa = 1.0 / (1.0 + jnp.exp(-conv))                        # sigmoid, (bt, 1, HW)
    o_ref[...] = (xc * sa).astype(o_ref.dtype)               # unmasked lane-dense store


def _conv_as_matrix(wconv_flat, H, W):
    """7x7 zero-padded cross-correlation on [avg ; max] as a (2*HW, HW) operator.

    concat([avg_flat, max_flat], -1) @ kmat == Conv2d(2, 1, 7, padding=3, bias=False)
    applied to the NCHW stack [avg, max], flattened.
    """
    HW = H * W
    taps = wconv_flat.reshape(2, KSIZE, KSIZE).astype(jnp.float32)
    kmat = jnp.zeros((2 * HW, HW), jnp.float32)
    for ch in range(2):
        for kh in range(KSIZE):
            for kw in range(KSIZE):
                dr, dc = kh - PAD, kw - PAD
                r = np.arange(max(0, -dr), min(H, H - dr))
                c = np.arange(max(0, -dc), min(W, W - dc))
                if r.size == 0 or c.size == 0:
                    continue
                out_idx = (r[:, None] * W + c[None, :]).reshape(-1)
                in_idx = ((r[:, None] + dr) * W + (c[None, :] + dc)).reshape(-1) + ch * HW
                kmat = kmat.at[in_idx, out_idx].set(taps[ch, kh, kw])
    return kmat


def _pick_batch_block(B, C, HW, itemsize):
    """Batch block: several grid steps for DMA overlap / v7x megacore, VMEM-bounded."""
    try:
        vmem_cap = int(pltpu.get_tpu_info().vmem_capacity_bytes)
    except Exception:
        vmem_cap = 64 << 20                         # conservative (v7x per-TC VMEM)
    budget = min(vmem_cap // 4, 24 << 20)           # stay well under the scoped limit
    fixed = 2 * HW * HW * 4                         # resident conv operator (2HW, HW) f32
    per_b = 2 * 2 * C * HW * max(int(itemsize), 4)  # double-buffered in + out blocks (f32 live)
    bt_vmem = max(1, (budget - fixed) // per_b)
    bt_steps = max(1, B // 8)                       # aim for >= 8 grid steps when B allows
    bt = int(max(1, min(B, bt_vmem, bt_steps, 16)))
    while B % bt:
        bt -= 1
    return bt


def cbam_pallas(x, w1, b1, w2, b2, wconv_flat, *, batch_block=None):
    """CBAM forward.

    x:     (B, C, H, W)
    w1:    (2C, hidden)   = fc1.weight.T
    b1:    (hidden,)      = fc1.bias
    w2:    (C, hidden)    = fc2.weight   (torch (out, in) layout)
    b2:    (C,)           = fc2.bias
    wconv: (2*7*7,)       = conv.weight.reshape(-1)   [avg-channel taps, then max]
    """
    B, C, H, W = x.shape
    HW = H * W
    hidden = w1.shape[1]
    itemsize = x.dtype.itemsize

    bt = _pick_batch_block(B, C, HW, itemsize) if batch_block is None else batch_block
    assert B % bt == 0, "batch_block must divide B"

    # Lane-dense views / kernel-friendly weight shapes (wrapper reshapes are free).
    x_flat = x.reshape(B, C, HW)
    w1k = w1.reshape(1, 2 * C, hidden).astype(jnp.float32)
    b1k = b1.reshape(1, 1, hidden).astype(jnp.float32)
    w2k = w2.reshape(1, C, hidden).astype(jnp.float32)
    b2k = b2.reshape(1, C, 1).astype(jnp.float32)
    # TODO(synk): for HW > ~2K the (2*HW, HW) operator gets too large; fall back to a
    # pltpu.roll-based shifted-add conv in that regime.
    kmat = _conv_as_matrix(wconv_flat, H, W)

    cost = pl.CostEstimate(
        flops=int(B * (6 * C * HW + 4 * HW * HW + 8 * C * hidden)),
        transcendentals=int(B * (C + HW)),
        bytes_accessed=int(2 * B * C * HW * itemsize + 2 * HW * HW * 4 + 16 * C * hidden),
    )

    try:
        vmem_cap = int(pltpu.get_tpu_info().vmem_capacity_bytes)
    except Exception:
        vmem_cap = 64 << 20
    vmem_limit = int(min(vmem_cap // 2, 64 << 20))

    out_flat = pl.pallas_call(
        cbam_kernel,
        out_shape=jax.ShapeDtypeStruct((B, C, HW), x.dtype),
        grid_spec=pltpu.PrefetchScalarGridSpec(
            num_scalar_prefetch=0,
            grid=(B // bt,),
            in_specs=[
                pl.BlockSpec((bt, C, HW), lambda g: (g, 0, 0)),         # x (lane-dense)
                pl.BlockSpec((1, 2 * C, hidden), lambda g: (0, 0, 0)),  # w1
                pl.BlockSpec((1, 1, hidden), lambda g: (0, 0, 0)),      # b1
                pl.BlockSpec((1, C, hidden), lambda g: (0, 0, 0)),      # w2
                pl.BlockSpec((1, C, 1), lambda g: (0, 0, 0)),           # b2
                pl.BlockSpec((2 * HW, HW), lambda g: (0, 0)),           # conv operator
            ],
            out_specs=pl.BlockSpec((bt, C, HW), lambda g: (g, 0, 0)),
        ),
        compiler_params=pltpu.CompilerParams(
            dimension_semantics=("parallel",),       # batch steps independent (v7x megacore)
            vmem_limit_bytes=vmem_limit),
        cost_estimate=cost,
    )(x_flat, w1k, b1k, w2k, b2k, kmat)

    return out_flat.reshape(B, C, H, W)


def cbam_ref(x, w1, b1, w2, b2, wconv_flat):
    """Pure-JAX reference matching the PyTorch forward."""
    avg = x.mean(axis=(2, 3))
    mx = x.max(axis=(2, 3))
    v = jnp.concatenate([avg, mx], axis=1)                              # (B, 2C)
    h = jnp.maximum(jnp.dot(v, w1, precision=lax.Precision.HIGHEST) + b1, 0.0)
    ca = jax.nn.sigmoid(jnp.dot(h, w2.T, precision=lax.Precision.HIGHEST) + b2)  # (B, C)
    xc = x * ca[:, :, None, None]
    avg_s = xc.mean(axis=1, keepdims=True)
    max_s = xc.max(axis=1, keepdims=True)
    s_in = jnp.concatenate([avg_s, max_s], axis=1)                      # (B, 2, H, W)
    wk = wconv_flat.reshape(1, 2, KSIZE, KSIZE)
    conv = lax.conv_general_dilated(
        s_in, wk, (1, 1), ((PAD, PAD), (PAD, PAD)),
        dimension_numbers=("NCHW", "OIHW", "NCHW"),
        precision=lax.Precision.HIGHEST)
    sa = jax.nn.sigmoid(conv)                                           # (B, 1, H, W)
    return xc * sa


if __name__ == "__main__":
    B, C, H, W = 2, 32, 16, 16
    ratio = 16
    hidden = max(C // ratio, 1)                                         # = 2

    key = jax.random.PRNGKey(0)
    k = jax.random.split(key, 6)
    x = jax.random.normal(k[0], (B, C, H, W), jnp.float32)
    # Deterministic synthetic params (module __init__ shapes; no checkpoint load).
    w1 = jax.random.normal(k[1], (2 * C, hidden), jnp.float32) * 0.1    # Linear(2C -> hidden), (in, out)
    b1 = jax.random.normal(k[2], (hidden,), jnp.float32) * 0.1
    w2 = jax.random.normal(k[3], (C, hidden), jnp.float32) * 0.1        # Linear(hidden -> C), (out, in)
    b2 = jax.random.normal(k[4], (C,), jnp.float32) * 0.1
    wconv = jax.random.normal(k[5], (2 * KSIZE * KSIZE,), jnp.float32) * 0.1  # Conv2d(2,1,7) flat

    out = jax.block_until_ready(cbam_pallas(x, w1, b1, w2, b2, wconv))
    ref = jax.block_until_ready(cbam_ref(x, w1, b1, w2, b2, wconv))

    assert out.shape == x.shape and out.dtype == x.dtype
    # Tolerance covers MXU f32 pass modes on the conv matmul; structural errors are O(1).
    np.testing.assert_allclose(np.asarray(out), np.asarray(ref), rtol=5e-3, atol=5e-3)
    print("KERNEL_OK")
</pallas_src>

<mosaic_0001>
module attributes {stable_mosaic.version = 11 : i64} {
  func.func @cbam_kernel(%arg0: i32, %arg1: memref<1x32x256xf32, #tpu.memory_space<vmem>>, %arg2: memref<1x64x2xf32, #tpu.memory_space<vmem>>, %arg3: memref<1x1x2xf32, #tpu.memory_space<vmem>>, %arg4: memref<1x32x2xf32, #tpu.memory_space<vmem>>, %arg5: memref<1x32x1xf32, #tpu.memory_space<vmem>>, %arg6: memref<512x256xf32, #tpu.memory_space<vmem>>, %arg7: memref<1x32x256xf32, #tpu.memory_space<vmem>>) attributes {dimension_semantics = [#tpu.dimension_semantics<parallel>], iteration_bounds = array<i64: 2>, scalar_prefetch = 0 : i64, scratch_operands = 0 : i64, tpu.core_type = #tpu.core_type<tc>, window_params = [{transform_indices = @transform_0, window_bounds = array<i64: 1, 32, 256>}, {pipeline_mode = #tpu.pipeline_mode<synchronous>, transform_indices = @transform_1, window_bounds = array<i64: 1, 64, 2>}, {pipeline_mode = #tpu.pipeline_mode<synchronous>, transform_indices = @transform_2, window_bounds = array<i64: 1, 1, 2>}, {pipeline_mode = #tpu.pipeline_mode<synchronous>, transform_indices = @transform_3, window_bounds = array<i64: 1, 32, 2>}, {pipeline_mode = #tpu.pipeline_mode<synchronous>, transform_indices = @transform_4, window_bounds = array<i64: 1, 32, 1>}, {pipeline_mode = #tpu.pipeline_mode<synchronous>, transform_indices = @transform_5, window_bounds = array<i64: 512, 256>}, {transform_indices = @transform_6, window_bounds = array<i64: 1, 32, 256>}]} {
    %c0 = arith.constant 0 : index
    %c0_0 = arith.constant 0 : index
    %c0_1 = arith.constant 0 : index
    %0 = vector.load %arg1[%c0, %c0_0, %c0_1] : memref<1x32x256xf32, #tpu.memory_space<vmem>>, vector<1x32x256xf32>
    %cst = arith.constant dense<0.000000e+00> : vector<1x32xf32>
    %1 = vector.multi_reduction <add>, %0, %cst [2] : vector<1x32x256xf32> to vector<1x32xf32>
    %2 = vector.shape_cast %1 : vector<1x32xf32> to vector<1x32x1xf32>
    %cst_2 = arith.constant 3.906250e-03 : f32
    %3 = vector.broadcast %cst_2 : f32 to vector<1x32x1xf32>
    %4 = arith.mulf %2, %3 : vector<1x32x1xf32>
    %cst_3 = arith.constant dense<0xFF800000> : vector<1x32xf32>
    %5 = vector.multi_reduction <maximumf>, %0, %cst_3 [2] : vector<1x32x256xf32> to vector<1x32xf32>
    %6 = vector.shape_cast %5 : vector<1x32xf32> to vector<1x32x1xf32>
    %7 = tpu.concatenate %4, %6 in 1 : vector<1x32x1xf32>, vector<1x32x1xf32> -> vector<1x64x1xf32>
    %c0_4 = arith.constant 0 : index
    %c0_5 = arith.constant 0 : index
    %c0_6 = arith.constant 0 : index
    %8 = vector.load %arg2[%c0_4, %c0_5, %c0_6] : memref<1x64x2xf32, #tpu.memory_space<vmem>>, vector<1x64x2xf32>
    %9 = vector.broadcast %7 : vector<1x64x1xf32> to vector<1x64x2xf32>
    %10 = arith.mulf %9, %8 : vector<1x64x2xf32>
    %cst_7 = arith.constant dense<0.000000e+00> : vector<1x2xf32>
    %11 = vector.multi_reduction <add>, %10, %cst_7 [1] : vector<1x64x2xf32> to vector<1x2xf32>
    %12 = vector.shape_cast %11 : vector<1x2xf32> to vector<1x1x2xf32>
    %c0_8 = arith.constant 0 : index
    %c0_9 = arith.constant 0 : index
    %c0_10 = arith.constant 0 : index
    %13 = vector.load %arg3[%c0_8, %c0_9, %c0_10] : memref<1x1x2xf32, #tpu.memory_space<vmem>>, vector<1x1x2xf32>
    %14 = arith.addf %12, %13 : vector<1x1x2xf32>
    %cst_11 = arith.constant 0.000000e+00 : f32
    %15 = vector.broadcast %cst_11 : f32 to vector<1x1x2xf32>
    %16 = arith.maximumf %14, %15 : vector<1x1x2xf32>
    %c0_12 = arith.constant 0 : index
    %c0_13 = arith.constant 0 : index
    %c0_14 = arith.constant 0 : index
    %17 = vector.load %arg4[%c0_12, %c0_13, %c0_14] : memref<1x32x2xf32, #tpu.memory_space<vmem>>, vector<1x32x2xf32>
    %18 = vector.broadcast %16 : vector<1x1x2xf32> to vector<1x32x2xf32>
    %19 = arith.mulf %17, %18 : vector<1x32x2xf32>
    %cst_15 = arith.constant dense<0.000000e+00> : vector<1x32xf32>
    %20 = vector.multi_reduction <add>, %19, %cst_15 [2] : vector<1x32x2xf32> to vector<1x32xf32>
    %21 = vector.shape_cast %20 : vector<1x32xf32> to vector<1x32x1xf32>
    %c0_16 = arith.constant 0 : index
    %c0_17 = arith.constant 0 : index
    %c0_18 = arith.constant 0 : index
    %22 = vector.load %arg5[%c0_16, %c0_17, %c0_18] : memref<1x32x1xf32, #tpu.memory_space<vmem>>, vector<1x32x1xf32>
    %23 = arith.addf %21, %22 : vector<1x32x1xf32>
    %cst_19 = arith.constant 0.000000e+00 : f32
    %24 = vector.broadcast %cst_19 : f32 to vector<1x32x1xf32>
    %25 = arith.subf %24, %23 : vector<1x32x1xf32>
    %26 = math.exp %25 : vector<1x32x1xf32>
    %cst_20 = arith.constant 1.000000e+00 : f32
    %27 = vector.broadcast %cst_20 : f32 to vector<1x32x1xf32>
    %28 = arith.addf %27, %26 : vector<1x32x1xf32>
    %cst_21 = arith.constant 1.000000e+00 : f32
    %29 = vector.broadcast %cst_21 : f32 to vector<1x32x1xf32>
    %30 = arith.divf %29, %28 : vector<1x32x1xf32>
    %31 = vector.broadcast %30 : vector<1x32x1xf32> to vector<1x32x256xf32>
    %32 = arith.mulf %0, %31 : vector<1x32x256xf32>
    %cst_22 = arith.constant dense<0.000000e+00> : vector<1x256xf32>
    %33 = vector.multi_reduction <add>, %32, %cst_22 [1] : vector<1x32x256xf32> to vector<1x256xf32>
    %34 = vector.shape_cast %33 : vector<1x256xf32> to vector<1x1x256xf32>
    %cst_23 = arith.constant 3.125000e-02 : f32
    %35 = vector.broadcast %cst_23 : f32 to vector<1x1x256xf32>
    %36 = arith.mulf %34, %35 : vector<1x1x256xf32>
    %cst_24 = arith.constant dense<0xFF800000> : vector<1x256xf32>
    %37 = vector.multi_reduction <maximumf>, %32, %cst_24 [1] : vector<1x32x256xf32> to vector<1x256xf32>
    %38 = vector.shape_cast %37 : vector<1x256xf32> to vector<1x1x256xf32>
    %39 = tpu.concatenate %36, %38 in 2 : vector<1x1x256xf32>, vector<1x1x256xf32> -> vector<1x1x512xf32>
    %c0_25 = arith.constant 0 : index
    %c0_26 = arith.constant 0 : index
    %40 = vector.load %arg6[%c0_25, %c0_26] : memref<512x256xf32, #tpu.memory_space<vmem>>, vector<512x256xf32>
    %41 = vector.shape_cast %39 : vector<1x1x512xf32> to vector<1x512xf32>
    %cst_27 = arith.constant dense<0.000000e+00> : vector<1x256xf32>
    %42 = tpu.matmul %41, %40, %cst_27 {dimension_numbers = #tpu.dot_dimension_numbers<[1], [0], [0], [1], [0, 0, 1, 1], [], []>} : vector<1x512xf32>, vector<512x256xf32>, vector<1x256xf32> -> vector<1x256xf32>
    %43 = vector.shape_cast %42 : vector<1x256xf32> to vector<1x1x256xf32>
    %cst_28 = arith.constant 0.000000e+00 : f32
    %44 = vector.broadcast %cst_28 : f32 to vector<1x1x256xf32>
    %45 = arith.subf %44, %43 : vector<1x1x256xf32>
    %46 = math.exp %45 : vector<1x1x256xf32>
    %cst_29 = arith.constant 1.000000e+00 : f32
    %47 = vector.broadcast %cst_29 : f32 to vector<1x1x256xf32>
    %48 = arith.addf %47, %46 : vector<1x1x256xf32>
    %cst_30 = arith.constant 1.000000e+00 : f32
    %49 = vector.broadcast %cst_30 : f32 to vector<1x1x256xf32>
    %50 = arith.divf %49, %48 : vector<1x1x256xf32>
    %51 = vector.broadcast %50 : vector<1x1x256xf32> to vector<1x32x256xf32>
    %52 = arith.mulf %32, %51 : vector<1x32x256xf32>
    %c0_31 = arith.constant 0 : index
    %c0_32 = arith.constant 0 : index
    %c0_33 = arith.constant 0 : index
    %53 = vector.load %arg7[%c0_31, %c0_32, %c0_33] : memref<1x32x256xf32, #tpu.memory_space<vmem>>, vector<1x32x256xf32>
    tpu.vector_store %arg7[%c0_31, %c0_32, %c0_33], %52 {strides = array<i32>} : memref<1x32x256xf32, #tpu.memory_space<vmem>>, vector<1x32x256xf32>,
    return
  }
  func.func @transform_0(%arg0: i32) -> (i32, i32, i32) {
    %c0_i32 = arith.constant 0 : i32
    %c0_i32_0 = arith.constant 0 : i32
    %c0_i32_1 = arith.constant 0 : i32
    return %arg0, %c0_i32, %c0_i32_0 : i32, i32, i32
  }
  func.func @transform_1(%arg0: i32) -> (i32, i32, i32) {
    %c0_i32 = arith.constant 0 : i32
    %c0_i32_0 = arith.constant 0 : i32
    %c0_i32_1 = arith.constant 0 : i32
    %c0_i32_2 = arith.constant 0 : i32
    return %c0_i32, %c0_i32_0, %c0_i32_1 : i32, i32, i32
  }
  func.func @transform_2(%arg0: i32) -> (i32, i32, i32) {
    %c0_i32 = arith.constant 0 : i32
    %c0_i32_0 = arith.constant 0 : i32
    %c0_i32_1 = arith.constant 0 : i32
    %c0_i32_2 = arith.constant 0 : i32
    return %c0_i32, %c0_i32_0, %c0_i32_1 : i32, i32, i32
  }
  func.func @transform_3(%arg0: i32) -> (i32, i32, i32) {
    %c0_i32 = arith.constant 0 : i32
    %c0_i32_0 = arith.constant 0 : i32
    %c0_i32_1 = arith.constant 0 : i32
    %c0_i32_2 = arith.constant 0 : i32
    return %c0_i32, %c0_i32_0, %c0_i32_1 : i32, i32, i32
  }
  func.func @transform_4(%arg0: i32) -> (i32, i32, i32) {
    %c0_i32 = arith.constant 0 : i32
    %c0_i32_0 = arith.constant 0 : i32
    %c0_i32_1 = arith.constant 0 : i32
    %c0_i32_2 = arith.constant 0 : i32
    return %c0_i32, %c0_i32_0, %c0_i32_1 : i32, i32, i32
  }
  func.func @transform_5(%arg0: i32) -> (i32, i32) {
    %c0_i32 = arith.constant 0 : i32
    %c0_i32_0 = arith.constant 0 : i32
    %c0_i32_1 = arith.constant 0 : i32
    return %c0_i32, %c0_i32_0 : i32, i32
  }
  func.func @transform_6(%arg0: i32) -> (i32, i32, i32) {
    %c0_i32 = arith.constant 0 : i32
    %c0_i32_0 = arith.constant 0 : i32
    %c0_i32_1 = arith.constant 0 : i32
    return %arg0, %c0_i32, %c0_i32_0 : i32, i32, i32
  }
}

</mosaic_0001>

<llo_original>
// kernel: tpu_custom_call.1
$region0: #{tpu_custom_call.1}
  #allocation0 [shape = 'u32[]', space=smem, size = 0x4, offset = 0x4, fixed_abs, tag = 'smem constant byte address 0x4 - core index']
  #allocation1 [shape = 'u32[144,128]{1,0:T(1,128)}', space=vmem, size = 0x12000, scoped, tag = 'internal scratch']
  %s0 = inlined_call_operand.vmem [shape: f32[2,32,256], index: 0, kind: input, shape index: {}]
  %s1 = inlined_call_operand.vmem [shape: f32[1,64,2], index: 1, kind: input, shape index: {}]
  %s2 = inlined_call_operand.vmem [shape: f32[1,1,2], index: 2, kind: input, shape index: {}]
  %s3 = inlined_call_operand.vmem [shape: f32[1,32,2], index: 3, kind: input, shape index: {}]
  %s4 = inlined_call_operand.vmem [shape: f32[1,32,1], index: 4, kind: input, shape index: {}]
  %s5 = inlined_call_operand.hbm [shape: f32[512,256], index: 5, kind: input, shape index: {}]
  %s6 = inlined_call_operand.hbm [shape: f32[2,32,256], index: 6, kind: output, shape index: {}]
  %s7 = sld [smem:[#allocation0]]
  $region61: #{tpu_custom_call.1} parent=0
    _
  %s9 = ssub.s32 1, %s7
  %s10 = scalar_select 0, %s9, %s7
  $region1: #{tpu_custom_call.1} parent=0
    #allocation2 [shape = 'u8[524288]{0}', space=vmem, size = 0x80000, scoped, tag = 'input window, operand 5, single buffered']
    #allocation3 [shape = 's32[2]{0}', space=sflag, size = 0x8, scoped, tag = 'scoped memory for tpu_custom_call.1']
    #allocation4 [shape = 's32[2]{0}', space=sflag, size = 0x8, scoped, tag = 'scoped memory for tpu_custom_call.1']
    #allocation5 [shape = 'u8[65536]{0}', space=vmem, size = 0x10000, scoped, tag = 'output window, operand 0']
    %11 = vsyncpa [#allocation3], 0
    %12 = vsyncpa [#allocation4], 0
    %s13 = scalar_lea.sflag [#allocation4], 1
    %14 = vsyncpa %s13, 0
    loop: start=0, step=1, limit=4
    $region2: #{tpu_custom_call.1} parent=1 // loop_pre_header
      _
    $region3: #{tpu_custom_call.1} parent=1 // loop_header
      %s16 = sphi 0, %s20
      %p17 = scmp.ge.s32.totalorder %s16, 4
      %s26 = sphi 0, %s28
      %s29 = sphi 0, %s26
      %s30 = sphi 0, %s29
      %s46 = sphi 0, %s30
      %s50 = sphi 0, %s50
      %s52 = sphi 0, %s50
      %s53 = sphi 0, %s52
      %s67 = sphi 0, %s53
      %s71 = sphi 0, %s71
      %s73 = sphi 0, %s71
      %s74 = sphi 0, %s73
      %s88 = sphi 0, %s74
      %s92 = sphi 0, %s92
      %s94 = sphi 0, %s92
      %s95 = sphi 0, %s94
      %s109 = sphi 0, %s95
      %s113 = sphi 0, %s113
      %s115 = sphi 0, %s113
      %s116 = sphi 0, %s115
      %s130 = sphi 0, %s116
      %s134 = sphi 0, %s134
      %s136 = sphi 0, %s134
      %s137 = sphi 0, %s136
      %s151 = sphi 0, %s137
      %s157 = sphi 0, %s159
      %s160 = sphi 0, %s157
      %s161 = sphi 0, %s160
      %s177 = sphi 0, %s161
    $region4: #{tpu_custom_call.1} parent=1 // loop_header_branch
      %19 = sbr.rel (%p17) target = $region8
    $region5: #{tpu_custom_call.1} parent=1 // loop_body
      %s21 = ssub.s32 %s16, 1
      %s22 = ssub.s32 %s16, 2
      %s23 = sadd.s32 %s16, 1
      %s24 = ssub.s32 %s16, %s23
      %p25 = scmp.eq.s32.totalorder %s24, 0
      %s27 = sadd.s32 %s26, 1
      %s28 = scalar_select %p25, %s26, %s27
      %p31 = pneg %p25
      %p32 = scmp.eq.s32.totalorder %s16, 1
      %p33 = por %p31, %p32
      %p34 = scmp.ne.s32.totalorder %s26, %s29
      %p35 = scmp.eq.s32.totalorder %s16, 0
      %p36 = por %p34, %p35
      %p37 = scmp.ne.s32.totalorder %s26, %s29
      %p38 = scmp.eq.s32.totalorder %s21, 1
      %p39 = por %p37, %p38
      %p40 = scmp.ne.s32.totalorder %s29, %s30
      %p41 = scmp.eq.s32.totalorder %s21, 0
      %p42 = por %p40, %p41
      %p43 = scmp.ne.s32.totalorder %s29, %s30
      %p44 = scmp.eq.s32.totalorder %s22, 1
      %p45 = por %p43, %p44
      %p47 = scmp.ne.s32.totalorder %s30, %s46
      %p48 = scmp.eq.s32.totalorder %s22, 0
      %p49 = por %p47, %p48
      %s51 = sadd.s32 %s50, 1
      %p54 = scmp.eq.s32.totalorder %s16, 1
      %p55 = scmp.ne.s32.totalorder %s50, %s52
      %p56 = scmp.eq.s32.totalorder %s16, 0
      %p57 = por %p55, %p56
      %p58 = scmp.ne.s32.totalorder %s50, %s52
      %p59 = scmp.eq.s32.totalorder %s21, 1
      %p60 = por %p58, %p59
      %p61 = scmp.ne.s32.totalorder %s52, %s53
      %p62 = scmp.eq.s32.totalorder %s21, 0
      %p63 = por %p61, %p62
      %p64 = scmp.ne.s32.totalorder %s52, %s53
      %p65 = scmp.eq.s32.totalorder %s22, 1
      %p66 = por %p64, %p65
      %p68 = scmp.ne.s32.totalorder %s53, %s67
      %p69 = scmp.eq.s32.totalorder %s22, 0
      %p70 = por %p68, %p69
      %s72 = sadd.s32 %s71, 1
      %p75 = scmp.eq.s32.totalorder %s16, 1
      %p76 = scmp.ne.s32.totalorder %s71, %s73
      %p77 = scmp.eq.s32.totalorder %s16, 0
      %p78 = por %p76, %p77
      %p79 = scmp.ne.s32.totalorder %s71, %s73
      %p80 = scmp.eq.s32.totalorder %s21, 1
      %p81 = por %p79, %p80
      %p82 = scmp.ne.s32.totalorder %s73, %s74
      %p83 = scmp.eq.s32.totalorder %s21, 0
      %p84 = por %p82, %p83
      %p85 = scmp.ne.s32.totalorder %s73, %s74
      %p86 = scmp.eq.s32.totalorder %s22, 1
      %p87 = por %p85, %p86
      %p89 = scmp.ne.s32.totalorder %s74, %s88
      %p90 = scmp.eq.s32.totalorder %s22, 0
      %p91 = por %p89, %p90
      %s93 = sadd.s32 %s92, 1
      %p96 = scmp.eq.s32.totalorder %s16, 1
      %p97 = scmp.ne.s32.totalorder %s92, %s94
      %p98 = scmp.eq.s32.totalorder %s16, 0
      %p99 = por %p97, %p98
      %p100 = scmp.ne.s32.totalorder %s92, %s94
      %p101 = scmp.eq.s32.totalorder %s21, 1
      %p102 = por %p100, %p101
      %p103 = scmp.ne.s32.totalorder %s94, %s95
      %p104 = scmp.eq.s32.totalorder %s21, 0
      %p105 = por %p103, %p104
      %p106 = scmp.ne.s32.totalorder %s94, %s95
      %p107 = scmp.eq.s32.totalorder %s22, 1
      %p108 = por %p106, %p107
      %p110 = scmp.ne.s32.totalorder %s95, %s109
      %p111 = scmp.eq.s32.totalorder %s22, 0
      %p112 = por %p110, %p111
      %s114 = sadd.s32 %s113, 1
      %p117 = scmp.eq.s32.totalorder %s16, 1
      %p118 = scmp.ne.s32.totalorder %s113, %s115
      %p119 = scmp.eq.s32.totalorder %s16, 0
      %p120 = por %p118, %p119
      %p121 = scmp.ne.s32.totalorder %s113, %s115
      %p122 = scmp.eq.s32.totalorder %s21, 1
      %p123 = por %p121, %p122
      %p124 = scmp.ne.s32.totalorder %s115, %s116
      %p125 = scmp.eq.s32.totalorder %s21, 0
      %p126 = por %p124, %p125
      %p127 = scmp.ne.s32.totalorder %s115, %s116
      %p128 = scmp.eq.s32.totalorder %s22, 1
      %p129 = por %p127, %p128
      %p131 = scmp.ne.s32.totalorder %s116, %s130
      %p132 = scmp.eq.s32.totalorder %s22, 0
      %p133 = por %p131, %p132
      %s135 = sadd.s32 %s134, 1
      %p138 = scmp.eq.s32.totalorder %s16, 1
      %p139 = scmp.ne.s32.totalorder %s134, %s136
      %p140 = scmp.eq.s32.totalorder %s16, 0
      %p141 = por %p139, %p140
      %p142 = scmp.ne.s32.totalorder %s134, %s136
      %p143 = scmp.eq.s32.totalorder %s21, 1
      %p144 = por %p142, %p143
      %p145 = scmp.ne.s32.totalorder %s136, %s137
      %p146 = scmp.eq.s32.totalorder %s21, 0
      %p147 = por %p145, %p146
      %p148 = scmp.ne.s32.totalorder %s136, %s137
      %p149 = scmp.eq.s32.totalorder %s22, 1
      %p150 = por %p148, %p149
      %p152 = scmp.ne.s32.totalorder %s137, %s151
      %p153 = scmp.eq.s32.totalorder %s22, 0
      %p154 = por %p152, %p153
      %s155 = ssub.s32 %s16, %s23
      %p156 = scmp.eq.s32.totalorder %s155, 0
      %s158 = sadd.s32 %s157, 1
      %s159 = scalar_select %p156, %s157, %s158
      %p162 = pneg %p156
      %p163 = scmp.eq.s32.totalorder %s16, 1
      %p164 = por %p162, %p163
      %p165 = scmp.ne.s32.totalorder %s157, %s160
      %p166 = scmp.eq.s32.totalorder %s16, 0
      %p167 = por %p165, %p166
      %p168 = scmp.ne.s32.totalorder %s157, %s160
      %p169 = scmp.eq.s32.totalorder %s21, 1
      %p170 = por %p168, %p169
      %p171 = scmp.ne.s32.totalorder %s160, %s161
      %p172 = scmp.eq.s32.totalorder %s21, 0
      %p173 = por %p171, %p172
      %p174 = scmp.ne.s32.totalorder %s160, %s161
      %p175 = scmp.eq.s32.totalorder %s22, 1
      %p176 = por %p174, %p175
      %p178 = scmp.ne.s32.totalorder %s161, %s177
      %p179 = scmp.eq.s32.totalorder %s22, 0
      %p180 = por %p178, %p179
      %p181 = scmp.le.s32.totalorder 1, %s16
      %p182 = scmp.lt.s32.totalorder %s16, 3
      %p183 = pnand %p181, %p182
      %p184 = pneg %p183
      // Predicated region
      $region9: #{tpu_custom_call.1} parent=5 // pred_check
        _
      $region10: #{tpu_custom_call.1} parent=5 // pred_check_branch
        %186 = sbr.rel (%p183) target = $region12
      $region11: #{tpu_custom_call.1} parent=5 // pred_region
        %s187 = ssub.s32 %s16, 1
        // Predicated region
        $region13: #{tpu_custom_call.1} parent=11 // pred_check
          %p188 = pneg %p63
        $region14: #{tpu_custom_call.1} parent=11 // pred_check_branch
          %190 = sbr.rel (%p188) target = $region16
        $region15: #{tpu_custom_call.1} parent=11 // pred_region
          _
        $region16: #{tpu_custom_call.1} parent=11 // pred_fallthru
          _
        // Predicated region
        $region17: #{tpu_custom_call.1} parent=11 // pred_check
          %p191 = pneg %p84
        $region18: #{tpu_custom_call.1} parent=11 // pred_check_branch
          %193 = sbr.rel (%p191) target = $region20
        $region19: #{tpu_custom_call.1} parent=11 // pred_region
          _
        $region20: #{tpu_custom_call.1} parent=11 // pred_fallthru
          _
        // Predicated region
        $region21: #{tpu_custom_call.1} parent=11 // pred_check
          %p194 = pneg %p105
        $region22: #{tpu_custom_call.1} parent=11 // pred_check_branch
          %196 = sbr.rel (%p194) target = $region24
        $region23: #{tpu_custom_call.1} parent=11 // pred_region
          _
        $region24: #{tpu_custom_call.1} parent=11 // pred_fallthru
          _
        // Predicated region
        $region25: #{tpu_custom_call.1} parent=11 // pred_check
          %p197 = pneg %p126
        $region26: #{tpu_custom_call.1} parent=11 // pred_check_branch
          %199 = sbr.rel (%p197) target = $region28
        $region27: #{tpu_custom_call.1} parent=11 // pred_region
          _
        $region28: #{tpu_custom_call.1} parent=11 // pred_fallthru
          _
        // Predicated region
        $region29: #{tpu_custom_call.1} parent=11 // pred_check
          %p200 = pneg %p147
        $region30: #{tpu_custom_call.1} parent=11 // pred_check_branch
          %202 = sbr.rel (%p200) target = $region32
        $region31: #{tpu_custom_call.1} parent=11 // pred_region
          %s204 = ssub.s32 16384, 16384
          %205 = vsyncadd [#allocation3], %s204
          %s206 = sshll.u32 [#allocation2], 4
          %s207 = int_to_ptr.vmem [resolvable:$true] %s206
          %212 = dma.hbm_to_vmem [thread:$0]  %s5, 16384, %s207, [#allocation3], 256, 256, 16
        $region32: #{tpu_custom_call.1} parent=11 // pred_fallthru
          _
      $region12: #{tpu_custom_call.1} parent=5 // pred_fallthru
        _
      %p213 = scmp.lt.s32.totalorder %s16, 2
      // Predicated region
      $region33: #{tpu_custom_call.1} parent=5 // pred_check
        %p214 = pneg %p213
      $region34: #{tpu_custom_call.1} parent=5 // pred_check_branch
        %216 = sbr.rel (%p214) target = $region36
      $region35: #{tpu_custom_call.1} parent=5 // pred_region
        // Predicated region
        $region37: #{tpu_custom_call.1} parent=35 // pred_check
          %p217 = pneg %p36
        $region38: #{tpu_custom_call.1} parent=35 // pred_check_branch
          %219 = sbr.rel (%p217) target = $region40
        $region39: #{tpu_custom_call.1} parent=35 // pred_region
          %p220 = scmp.lt.s32.totalorder %s16, 1
          %s221 = scalar_select %p220, %s16, 1
          %s222 = smul.addr %s221, 8
          %s223 = smul.addr %s222, 8
          %s224 = scalar_lea.vmem %s0, %s223
        $region40: #{tpu_custom_call.1} parent=35 // pred_fallthru
          _
      $region36: #{tpu_custom_call.1} parent=5 // pred_fallthru
        _
      %p225 = scmp.le.s32.totalorder 1, %s16
      %p226 = scmp.lt.s32.totalorder %s16, 3
      %p227 = pnand %p225, %p226
      %p228 = pneg %p227
      // Predicated region
      $region41: #{tpu_custom_call.1} parent=5 // pred_check
        _
      $region42: #{tpu_custom_call.1} parent=5 // pred_check_branch
        %230 = sbr.rel (%p227) target = $region44
      $region43: #{tpu_custom_call.1} parent=5 // pred_region
        %s231 = ssub.s32 %s16, 1
        // Predicated region
        $region45: #{tpu_custom_call.1} parent=43 // pred_check
          %p232 = pneg %p147
        $region46: #{tpu_custom_call.1} parent=43 // pred_check_branch
          %234 = sbr.rel (%p232) target = $region48
        $region47: #{tpu_custom_call.1} parent=43 // pred_region
          %235 = dma.done [#allocation3], 16384
        $region48: #{tpu_custom_call.1} parent=43 // pred_fallthru
          _
        %p236 = scmp.lt.s32.totalorder %s21, 1
        %s237 = scalar_select %p236, %s21, 1
        %s238 = smul.addr %s237, 8
        %s239 = smul.addr %s238, 8
        %s240 = scalar_lea.vmem %s0, %s239
        %p241 = pneg %p42
        %p242 = pneg %p39
        %p243 = pneg %p63
        %p244 = pneg %p60
        %p245 = pneg %p84
        %p246 = pneg %p81
        %p247 = pneg %p105
        %p248 = pneg %p102
        %p249 = pneg %p126
        %p250 = pneg %p123
        %p251 = pneg %p147
        %p252 = pneg %p144
        %p253 = pneg %p173
        %p254 = pneg %p170
        %s255 = sand.u32 %s160, 1
        %s256 = scalar_lea.sflag [#allocation4], %s255
        %s257 = sand.u32 %s160, 1
        %s258 = smul.addr %s257, 64
        %s259 = scalar_lea.vmem [#allocation5], %s258
        %p260 = scmp.lt.s32.totalorder %s21, 1
        %s261 = scalar_select %p260, %s21, 1
        %s262 = smul.addr %s261, 8
        %s263 = smul.addr %s262, 8
        %s264 = scalar_lea.vmem %s0, %s263
        %v265 = vld [vmem:[%s264] sm:$0xff]
        %v266 = vld [vmem:[%s264 + $0x8] sm:$0xff]
        %v267 = vld [vmem:[%s264 + $0x10] sm:$0xff]
        %v268 = vld [vmem:[%s264 + $0x18] sm:$0xff]
        %v269 = vld [vmem:[%s264 + $0x20] sm:$0xff]
        %v270 = vld [vmem:[%s264 + $0x28] sm:$0xff]
        %v271 = vld [vmem:[%s264 + $0x30] sm:$0xff]
        %v272 = vld [vmem:[%s264 + $0x38] sm:$0xff]
        %v273 = vadd.f32 %v265, %v266
        %274 = vadd.xlane.f32.xlu0 %v273
        %v275 = vpop.xlane.xlu0 %274
        %v276 = vadd.f32 %v267, %v268
        %277 = vadd.xlane.f32.xlu0 %v276
        %v278 = vpop.xlane.xlu0 %277
        %v279 = vadd.f32 %v269, %v270
        %280 = vadd.xlane.f32.xlu0 %v279
        %v281 = vpop.xlane.xlu0 %280
        %v282 = vadd.f32 %v271, %v272
        %283 = vadd.xlane.f32.xlu0 %v282
        %v284 = vpop.xlane.xlu0 %283
        %v285 = vmul.f32 %v275, 0.00390625
        %v286 = vmul.f32 %v278, 0.00390625
        %v287 = vmul.f32 %v281, 0.00390625
        %v288 = vmul.f32 %v284, 0.00390625
        %v289 = vmax.f32 %v265, %v266
        %290 = vmax.xlane.f32.xlu0 %v289
        %v291 = vpop.xlane.xlu0 %290
        %v292 = vmax.f32 %v267, %v268
        %293 = vmax.xlane.f32.xlu0 %v292
        %v294 = vpop.xlane.xlu0 %293
        %v295 = vmax.f32 %v269, %v270
        %296 = vmax.xlane.f32.xlu0 %v295
        %v297 = vpop.xlane.xlu0 %296
        %v298 = vmax.f32 %v271, %v272
        %299 = vmax.xlane.f32.xlu0 %v298
        %v300 = vpop.xlane.xlu0 %299
        %v301 = vld [vmem:[%s1] sm:$0xff]
        %v302 = vld [vmem:[%s1 + $0x8] sm:$0xff]
        %v303 = vld [vmem:[%s1 + $0x10] sm:$0xff]
        %v304 = vld [vmem:[%s1 + $0x18] sm:$0xff]
        %v305 = vld [vmem:[%s1 + $0x20] sm:$0xff]
        %v306 = vld [vmem:[%s1 + $0x28] sm:$0xff]
        %v307 = vld [vmem:[%s1 + $0x30] sm:$0xff]
        %v308 = vld [vmem:[%s1 + $0x38] sm:$0xff]
        %310 = vset.pattern.permute.xlu0 0
        %311 = vperm.xlu0 %310, %v285
        %v312 = vpop.permute.xlu0 %311
        %315 = vset.pattern.permute.xlu0 0
        %316 = vperm.xlu0 %315, %v286
        %v317 = vpop.permute.xlu0 %316
        %320 = vset.pattern.permute.xlu0 0
        %321 = vperm.xlu0 %320, %v287
        %v322 = vpop.permute.xlu0 %321
        %325 = vset.pattern.permute.xlu0 0
        %326 = vperm.xlu0 %325, %v288
        %v327 = vpop.permute.xlu0 %326
        %330 = vset.pattern.permute.xlu0 0
        %331 = vperm.xlu0 %330, %v291
        %v332 = vpop.permute.xlu0 %331
        %335 = vset.pattern.permute.xlu0 0
        %336 = vperm.xlu0 %335, %v294
        %v337 = vpop.permute.xlu0 %336
        %340 = vset.pattern.permute.xlu0 0
        %341 = vperm.xlu0 %340, %v297
        %v342 = vpop.permute.xlu0 %341
        %345 = vset.pattern.permute.xlu0 0
        %346 = vperm.xlu0 %345, %v300
        %v347 = vpop.permute.xlu0 %346
        %v349 = vmul.f32 %v312, %v301
        %v350 = vmul.f32 %v317, %v302
        %v351 = vmul.f32 %v322, %v303
        %v352 = vmul.f32 %v327, %v304
        %v353 = vmul.f32 %v332, %v305
        %v354 = vmul.f32 %v337, %v306
        %v355 = vmul.f32 %v342, %v307
        %v356 = vmul.f32 %v347, %v308
        %vm357 = vcmask 15360
        %v358 = vsel %vm357, %v349, 0.0
        %v359 = vsel %vm357, %v350, 0.0
        %v360 = vadd.f32 %v358, %v359
        %v361 = vsel %vm357, %v351, 0.0
        %v362 = vadd.f32 %v360, %v361
        %v363 = vsel %vm357, %v352, 0.0
        %v364 = vadd.f32 %v362, %v363
        %v365 = vsel %vm357, %v353, 0.0
        %v366 = vadd.f32 %v364, %v365
        %v367 = vsel %vm357, %v354, 0.0
        %v368 = vadd.f32 %v366, %v367
        %v369 = vsel %vm357, %v355, 0.0
        %v370 = vadd.f32 %v368, %v369
        %v371 = vsel %vm357, %v356, 0.0
        %v372 = vadd.f32 %v370, %v371
        %v373 = vrot.slane %v372, 4
        %v374 = vadd.f32 %v372, %v373
        %v375 = vrot.slane %v374, 2
        %v376 = vadd.f32 %v374, %v375
        %v377 = vrot.slane %v376, 1
        %v378 = vadd.f32 %v376, %v377
        %v379 = vld [vmem:[%s2] sm:$0x1]
        %v380 = vadd.f32 %v378, %v379
        %v381 = vmax.f32 %v380, 0.0
        %v382 = vld [vmem:[%s3] sm:$0xff]
        %v383 = vld [vmem:[%s3 + $0x8] sm:$0xff]
        %v384 = vld [vmem:[%s3 + $0x10] sm:$0xff]
        %v385 = vld [vmem:[%s3 + $0x18] sm:$0xff]
        %v386 = vlaneseq
        %v387 = vshrl.u32 %v386, 7
        %v388 = vsub.s32 0, %v387
        %v389 = vrot.slane %v381, %v388
        %v390 = vmul.f32 %v382, %v389
        %v391 = vmul.f32 %v383, %v389
        %v392 = vmul.f32 %v384, %v389
        %v393 = vmul.f32 %v385, %v389
        %v394 = vsel %vm357, %v390, 0.0
        %395 = vadd.xlane.f32.xlu0 %v394
        %v396 = vpop.xlane.xlu0 %395
        %v397 = vsel %vm357, %v391, 0.0
        %398 = vadd.xlane.f32.xlu0 %v397
        %v399 = vpop.xlane.xlu0 %398
        %v400 = vsel %vm357, %v392, 0.0
        %401 = vadd.xlane.f32.xlu0 %v400
        %v402 = vpop.xlane.xlu0 %401
        %v403 = vsel %vm357, %v393, 0.0
        %404 = vadd.xlane.f32.xlu0 %v403
        %v405 = vpop.xlane.xlu0 %404
        %v406 = vld [vmem:[%s4] sm:$0xff]
        %v407 = vld [vmem:[%s4 + $0x8] sm:$0xff]
        %v408 = vld [vmem:[%s4 + $0x10] sm:$0xff]
        %v409 = vld [vmem:[%s4 + $0x18] sm:$0xff]
        %v410 = vadd.f32 %v396, %v406
        %v411 = vadd.f32 %v399, %v407
        %v412 = vadd.f32 %v402, %v408
        %v413 = vadd.f32 %v405, %v409
        %v414 = vsub.f32 0.0, %v410
        %v415 = vsub.f32 0.0, %v411
        %v416 = vsub.f32 0.0, %v412
        %v417 = vsub.f32 0.0, %v413
        %v418 = vmul.f32 %v414, 1.442695
        %v419 = vpow.pop %v418
        %v420 = vmul.f32 %v415, 1.442695
        %v421 = vpow.pop %v420
        %v422 = vmul.f32 %v416, 1.442695
        %v423 = vpow.pop %v422
        %v424 = vmul.f32 %v417, 1.442695
        %v425 = vpow.pop %v424
        %v426 = vadd.f32 %v419, 1.0
        %v427 = vadd.f32 %v421, 1.0
        %v428 = vadd.f32 %v423, 1.0
        %v429 = vadd.f32 %v425, 1.0
        %v430 = vrcp.pop %v426
        %v431 = vmul.f32 1.0, %v430
        %v432 = vrcp.pop %v427
        %v433 = vmul.f32 1.0, %v432
        %v434 = vrcp.pop %v428
        %v435 = vmul.f32 1.0, %v434
        %v436 = vrcp.pop %v429
        %v437 = vmul.f32 1.0, %v436
        %439 = vset.pattern.permute.xlu0 0
        %440 = vperm.xlu0 %439, %v431
        %v441 = vpop.permute.xlu0 %440
        %444 = vset.pattern.permute.xlu0 0
        %445 = vperm.xlu0 %444, %v433
        %v446 = vpop.permute.xlu0 %445
        %449 = vset.pattern.permute.xlu0 0
        %450 = vperm.xlu0 %449, %v435
        %v451 = vpop.permute.xlu0 %450
        %454 = vset.pattern.permute.xlu0 0
        %455 = vperm.xlu0 %454, %v437
        %v456 = vpop.permute.xlu0 %455
        %v458 = vmul.f32 %v265, %v441
        %v459 = vmul.f32 %v266, %v441
        %v460 = vmul.f32 %v267, %v446
        %v461 = vmul.f32 %v268, %v446
        %v462 = vmul.f32 %v269, %v451
        %v463 = vmul.f32 %v270, %v451
        %v464 = vmul.f32 %v271, %v456
        %v465 = vmul.f32 %v272, %v456
        %v466 = vadd.f32 %v458, %v460
        %v467 = vadd.f32 %v466, %v462
        %v468 = vadd.f32 %v467, %v464
        %v469 = vrot.slane %v468, 4
        %v470 = vadd.f32 %v468, %v469
        %v471 = vrot.slane %v470, 2
        %v472 = vadd.f32 %v470, %v471
        %v473 = vrot.slane %v472, 1
        %v474 = vadd.f32 %v472, %v473
        %v475 = vadd.f32 %v459, %v461
        %v476 = vadd.f32 %v475, %v463
        %v477 = vadd.f32 %v476, %v465
        %v478 = vrot.slane %v477, 4
        %v479 = vadd.f32 %v477, %v478
        %v480 = vrot.slane %v479, 2
        %v481 = vadd.f32 %v479, %v480
        %v482 = vrot.slane %v481, 1
        %v483 = vadd.f32 %v481, %v482
        %v484 = vmul.f32 %v474, 0.03125
        %v485 = vmul.f32 %v483, 0.03125
        %v486 = vmax.f32 %v458, %v462
        %v487 = vmax.f32 %v460, %v464
        %v488 = vmax.f32 %v486, %v487
        %v489 = vrot.slane %v488, 4
        %v490 = vmax.f32 %v488, %v489
        %v491 = vrot.slane %v490, 2
        %v492 = vmax.f32 %v490, %v491
        %v493 = vrot.slane %v492, 1
        %v494 = vmax.f32 %v492, %v493
        %v495 = vmax.f32 %v459, %v463
        %v496 = vmax.f32 %v461, %v465
        %v497 = vmax.f32 %v495, %v496
        %v498 = vrot.slane %v497, 4
        %v499 = vmax.f32 %v497, %v498
        %v500 = vrot.slane %v499, 2
        %v501 = vmax.f32 %v499, %v500
        %v502 = vrot.slane %v501, 1
        %v503 = vmax.f32 %v501, %v502
        %v504 = vld [vmem:[#allocation2] sm:$0xff]
        %v505 = vld [vmem:[#allocation2 + $0x8] sm:$0xff]
        %v506 = vld [vmem:[#allocation2 + $0x10] sm:$0xff]
        %v507 = vld [vmem:[#allocation2 + $0x18] sm:$0xff]
        %v508 = vld [vmem:[#allocation2 + $0x20] sm:$0xff]
        %v509 = vld [vmem:[#allocation2 + $0x28] sm:$0xff]
        %v510 = vld [vmem:[#allocation2 + $0x30] sm:$0xff]
        %v511 = vld [vmem:[#allocation2 + $0x38] sm:$0xff]
        %v512 = vld [vmem:[#allocation2 + $0x40] sm:$0xff]
        %v513 = vld [vmem:[#allocation2 + $0x48] sm:$0xff]
        %v514 = vld [vmem:[#allocation2 + $0x50] sm:$0xff]
        %v515 = vld [vmem:[#allocation2 + $0x58] sm:$0xff]
        %v516 = vld [vmem:[#allocation2 + $0x60] sm:$0xff]
        %v517 = vld [vmem:[#allocation2 + $0x68] sm:$0xff]
        %v518 = vld [vmem:[#allocation2 + $0x70] sm:$0xff]
        %v519 = vld [vmem:[#allocation2 + $0x78] sm:$0xff]
        %v520 = vld [vmem:[#allocation2 + $0x80] sm:$0xff]
        %v521 = vld [vmem:[#allocation2 + $0x88] sm:$0xff]
        %v522 = vld [vmem:[#allocation2 + $0x90] sm:$0xff]
        %v523 = vld [vmem:[#allocation2 + $0x98] sm:$0xff]
        %v524 = vld [vmem:[#allocation2 + $0xa0] sm:$0xff]
        %v525 = vld [vmem:[#allocation2 + $0xa8] sm:$0xff]
        %v526 = vld [vmem:[#allocation2 + $0xb0] sm:$0xff]
        %v527 = vld [vmem:[#allocation2 + $0xb8] sm:$0xff]
        %v528 = vld [vmem:[#allocation2 + $0xc0] sm:$0xff]
        %v529 = vld [vmem:[#allocation2 + $0xc8] sm:$0xff]
        %v530 = vld [vmem:[#allocation2 + $0xd0] sm:$0xff]
        %v531 = vld [vmem:[#allocation2 + $0xd8] sm:$0xff]
        %v532 = vld [vmem:[#allocation2 + $0xe0] sm:$0xff]
        %v533 = vld [vmem:[#allocation2 + $0xe8] sm:$0xff]
        %v534 = vld [vmem:[#allocation2 + $0xf0] sm:$0xff]
        %v535 = vld [vmem:[#allocation2 + $0xf8] sm:$0xff]
        %v536 = vld [vmem:[#allocation2 + $0x100] sm:$0xff]
        %v537 = vld [vmem:[#allocation2 + $0x108] sm:$0xff]
        %v538 = vld [vmem:[#allocation2 + $0x110] sm:$0xff]
        %v539 = vld [vmem:[#allocation2 + $0x118] sm:$0xff]
        %v540 = vld [vmem:[#allocation2 + $0x120] sm:$0xff]
        %v541 = vld [vmem:[#allocation2 + $0x128] sm:$0xff]
        %v542 = vld [vmem:[#allocation2 + $0x130] sm:$0xff]
        %v543 = vld [vmem:[#allocation2 + $0x138] sm:$0xff]
        %v544 = vld [vmem:[#allocation2 + $0x140] sm:$0xff]
        %v545 = vld [vmem:[#allocation2 + $0x148] sm:$0xff]
        %v546 = vld [vmem:[#allocation2 + $0x150] sm:$0xff]
        %v547 = vld [vmem:[#allocation2 + $0x158] sm:$0xff]
        %v548 = vld [vmem:[#allocation2 + $0x160] sm:$0xff]
        %v549 = vld [vmem:[#allocation2 + $0x168] sm:$0xff]
        %v550 = vld [vmem:[#allocation2 + $0x170] sm:$0xff]
        %v551 = vld [vmem:[#allocation2 + $0x178] sm:$0xff]
        %v552 = vld [vmem:[#allocation2 + $0x180] sm:$0xff]
        %v553 = vld [vmem:[#allocation2 + $0x188] sm:$0xff]
        %v554 = vld [vmem:[#allocation2 + $0x190] sm:$0xff]
        %v555 = vld [vmem:[#allocation2 + $0x198] sm:$0xff]
        %v556 = vld [vmem:[#allocation2 + $0x1a0] sm:$0xff]
        %v557 = vld [vmem:[#allocation2 + $0x1a8] sm:$0xff]
        %v558 = vld [vmem:[#allocation2 + $0x1b0] sm:$0xff]
        %v559 = vld [vmem:[#allocation2 + $0x1b8] sm:$0xff]
        %v560 = vld [vmem:[#allocation2 + $0x1c0] sm:$0xff]
        %v561 = vld [vmem:[#allocation2 + $0x1c8] sm:$0xff]
        %v562 = vld [vmem:[#allocation2 + $0x1d0] sm:$0xff]
        %v563 = vld [vmem:[#allocation2 + $0x1d8] sm:$0xff]
        %v564 = vld [vmem:[#allocation2 + $0x1e0] sm:$0xff]
        %v565 = vld [vmem:[#allocation2 + $0x1e8] sm:$0xff]
        %v566 = vld [vmem:[#allocation2 + $0x1f0] sm:$0xff]
        %v567 = vld [vmem:[#allocation2 + $0x1f8] sm:$0xff]
        %v568 = vld [vmem:[#allocation2 + $0x200] sm:$0xff]
        %v569 = vld [vmem:[#allocation2 + $0x208] sm:$0xff]
        %v570 = vld [vmem:[#allocation2 + $0x210] sm:$0xff]
        %v571 = vld [vmem:[#allocation2 + $0x218] sm:$0xff]
        %v572 = vld [vmem:[#allocation2 + $0x220] sm:$0xff]
        %v573 = vld [vmem:[#allocation2 + $0x228] sm:$0xff]
        %v574 = vld [vmem:[#allocation2 + $0x230] sm:$0xff]
        %v575 = vld [vmem:[#allocation2 + $0x238] sm:$0xff]
        %v576 = vld [vmem:[#allocation2 + $0x240] sm:$0xff]
        %v577 = vld [vmem:[#allocation2 + $0x248] sm:$0xff]
        %v578 = vld [vmem:[#allocation2 + $0x250] sm:$0xff]
        %v579 = vld [vmem:[#allocation2 + $0x258] sm:$0xff]
        %v580 = vld [vmem:[#allocation2 + $0x260] sm:$0xff]
        %v581 = vld [vmem:[#allocation2 + $0x268] sm:$0xff]
        %v582 = vld [vmem:[#allocation2 + $0x270] sm:$0xff]
        %v583 = vld [vmem:[#allocation2 + $0x278] sm:$0xff]
        %v584 = vld [vmem:[#allocation2 + $0x280] sm:$0xff]
        %v585 = vld [vmem:[#allocation2 + $0x288] sm:$0xff]
        %v586 = vld [vmem:[#allocation2 + $0x290] sm:$0xff]
        %v587 = vld [vmem:[#allocation2 + $0x298] sm:$0xff]
        %v588 = vld [vmem:[#allocation2 + $0x2a0] sm:$0xff]
        %v589 = vld [vmem:[#allocation2 + $0x2a8] sm:$0xff]
        %v590 = vld [vmem:[#allocation2 + $0x2b0] sm:$0xff]
        %v591 = vld [vmem:[#allocation2 + $0x2b8] sm:$0xff]
        %v592 = vld [vmem:[#allocation2 + $0x2c0] sm:$0xff]
        %v593 = vld [vmem:[#allocation2 + $0x2c8] sm:$0xff]
        %v594 = vld [vmem:[#allocation2 + $0x2d0] sm:$0xff]
        %v595 = vld [vmem:[#allocation2 + $0x2d8] sm:$0xff]
        %v596 = vld [vmem:[#allocation2 + $0x2e0] sm:$0xff]
        %v597 = vld [vmem:[#allocation2 + $0x2e8] sm:$0xff]
        %v598 = vld [vmem:[#allocation2 + $0x2f0] sm:$0xff]
        %v599 = vld [vmem:[#allocation2 + $0x2f8] sm:$0xff]
        %v600 = vld [vmem:[#allocation2 + $0x300] sm:$0xff]
        %v601 = vld [vmem:[#allocation2 + $0x308] sm:$0xff]
        %v602 = vld [vmem:[#allocation2 + $0x310] sm:$0xff]
        %v603 = vld [vmem:[#allocation2 + $0x318] sm:$0xff]
        %v604 = vld [vmem:[#allocation2 + $0x320] sm:$0xff]
        %v605 = vld [vmem:[#allocation2 + $0x328] sm:$0xff]
        %v606 = vld [vmem:[#allocation2 + $0x330] sm:$0xff]
        %v607 = vld [vmem:[#allocation2 + $0x338] sm:$0xff]
        %v608 = vld [vmem:[#allocation2 + $0x340] sm:$0xff]
        %v609 = vld [vmem:[#allocation2 + $0x348] sm:$0xff]
        %v610 = vld [vmem:[#allocation2 + $0x350] sm:$0xff]
        %v611 = vld [vmem:[#allocation2 + $0x358] sm:$0xff]
        %v612 = vld [vmem:[#allocation2 + $0x360] sm:$0xff]
        %v613 = vld [vmem:[#allocation2 + $0x368] sm:$0xff]
        %v614 = vld [vmem:[#allocation2 + $0x370] sm:$0xff]
        %v615 = vld [vmem:[#allocation2 + $0x378] sm:$0xff]
        %v616 = vld [vmem:[#allocation2 + $0x380] sm:$0xff]
        %v617 = vld [vmem:[#allocation2 + $0x388] sm:$0xff]
        %v618 = vld [vmem:[#allocation2 + $0x390] sm:$0xff]
        %v619 = vld [vmem:[#allocation2 + $0x398] sm:$0xff]
        %v620 = vld [vmem:[#allocation2 + $0x3a0] sm:$0xff]
        %v621 = vld [vmem:[#allocation2 + $0x3a8] sm:$0xff]
        %v622 = vld [vmem:[#allocation2 + $0x3b0] sm:$0xff]
        %v623 = vld [vmem:[#allocation2 + $0x3b8] sm:$0xff]
        %v624 = vld [vmem:[#allocation2 + $0x3c0] sm:$0xff]
        %v625 = vld [vmem:[#allocation2 + $0x3c8] sm:$0xff]
        %v626 = vld [vmem:[#allocation2 + $0x3d0] sm:$0xff]
        %v627 = vld [vmem:[#allocation2 + $0x3d8] sm:$0xff]
        %v628 = vld [vmem:[#allocation2 + $0x3e0] sm:$0xff]
        %v629 = vld [vmem:[#allocation2 + $0x3e8] sm:$0xff]
        %v630 = vld [vmem:[#allocation2 + $0x3f0] sm:$0xff]
        %v631 = vld [vmem:[#allocation2 + $0x3f8] sm:$0xff]
        %632 = vmatprep.subr.mxu0 %v505
        %633 = vmatpush1.msra.mxu0 %v504
        %634 = vmatprep.subr.mxu0 %v507
        %635 = vmatpush1.msra.mxu0 %v506
        %636 = vmatprep.subr.mxu0 %v509
        %637 = vmatpush1.msra.mxu0 %v508
        %638 = vmatprep.subr.mxu0 %v511
        %639 = vmatpush1.msra.mxu0 %v510
        %640 = vmatprep.subr.mxu0 %v513
        %641 = vmatpush1.msra.mxu0 %v512
        %642 = vmatprep.subr.mxu0 %v515
        %643 = vmatpush1.msra.mxu0 %v514
        %644 = vmatprep.subr.mxu0 %v517
        %645 = vmatpush1.msra.mxu0 %v516
        %646 = vmatprep.subr.mxu0 %v519
        %647 = vmatpush1.msra.mxu0 %v518
        %648 = vmatprep.subr.mxu0 %v521
        %649 = vmatpush1.msra.mxu0 %v520
        %650 = vmatprep.subr.mxu0 %v523
        %651 = vmatpush1.msra.mxu0 %v522
        %652 = vmatprep.subr.mxu0 %v525
        %653 = vmatpush1.msra.mxu0 %v524
        %654 = vmatprep.subr.mxu0 %v527
        %655 = vmatpush1.msra.mxu0 %v526
        %656 = vmatprep.subr.mxu0 %v529
        %657 = vmatpush1.msra.mxu0 %v528
        %658 = vmatprep.subr.mxu0 %v531
        %659 = vmatpush1.msra.mxu0 %v530
        %660 = vmatprep.subr.mxu0 %v533
        %661 = vmatpush1.msra.mxu0 %v532
        %662 = vmatprep.subr.mxu0 %v535
        %663 = vmatpush1.msra.mxu0 %v534
        %664 = vmatprep.subr.mxu0 %v537
        %665 = vmatpush1.msra.mxu0 %v536
        %666 = vmatprep.subr.mxu0 %v539
        %667 = vmatpush1.msra.mxu0 %v538
        %668 = vmatprep.subr.mxu0 %v541
        %669 = vmatpush1.msra.mxu0 %v540
        %670 = vmatprep.subr.mxu0 %v543
        %671 = vmatpush1.msra.mxu0 %v542
        %672 = vmatprep.subr.mxu0 %v545
        %673 = vmatpush1.msra.mxu0 %v544
        %674 = vmatprep.subr.mxu0 %v547
        %675 = vmatpush1.msra.mxu0 %v546
        %676 = vmatprep.subr.mxu0 %v549
        %677 = vmatpush1.msra.mxu0 %v548
        %678 = vmatprep.subr.mxu0 %v551
        %679 = vmatpush1.msra.mxu0 %v550
        %680 = vmatprep.subr.mxu0 %v553
        %681 = vmatpush1.msra.mxu0 %v552
        %682 = vmatprep.subr.mxu0 %v555
        %683 = vmatpush1.msra.mxu0 %v554
        %684 = vmatprep.subr.mxu0 %v557
        %685 = vmatpush1.msra.mxu0 %v556
        %686 = vmatprep.subr.mxu0 %v559
        %687 = vmatpush1.msra.mxu0 %v558
        %688 = vmatprep.subr.mxu0 %v561
        %689 = vmatpush1.msra.mxu0 %v560
        %690 = vmatprep.subr.mxu0 %v563
        %691 = vmatpush1.msra.mxu0 %v562
        %692 = vmatprep.subr.mxu0 %v565
        %693 = vmatpush1.msra.mxu0 %v564
        %694 = vmatprep.subr.mxu0 %v567
        %695 = vmatpush1.msra.mxu0 %v566
        %696 = vmatprep.mubr.f32.mxu0 %v485
        %697 = vmatmul.mubr.f32.gmra.mrb[0].mxu0 %v484
        %v698 = vpop.f32.mrb[0].mxu0
        %v699 = vadd.f32 0.0, %v698
        %v700 = vpop.f32.mrb[0].mxu0
        %v701 = vadd.f32 0.0, %v700
        %702 = vdwg.mxu0
        %703 = vmatprep.subr.mxu0 %v569
        %704 = vmatpush1.msra.mxu0 %v568
        %705 = vmatprep.subr.mxu0 %v571
        %706 = vmatpush1.msra.mxu0 %v570
        %707 = vmatprep.subr.mxu0 %v573
        %708 = vmatpush1.msra.mxu0 %v572
        %709 = vmatprep.subr.mxu0 %v575
        %710 = vmatpush1.msra.mxu0 %v574
        %711 = vmatprep.subr.mxu0 %v577
        %712 = vmatpush1.msra.mxu0 %v576
        %713 = vmatprep.subr.mxu0 %v579
        %714 = vmatpush1.msra.mxu0 %v578
        %715 = vmatprep.subr.mxu0 %v581
        %716 = vmatpush1.msra.mxu0 %v580
        %717 = vmatprep.subr.mxu0 %v583
        %718 = vmatpush1.msra.mxu0 %v582
        %719 = vmatprep.subr.mxu0 %v585
        %720 = vmatpush1.msra.mxu0 %v584
        %721 = vmatprep.subr.mxu0 %v587
        %722 = vmatpush1.msra.mxu0 %v586
        %723 = vmatprep.subr.mxu0 %v589
        %724 = vmatpush1.msra.mxu0 %v588
        %725 = vmatprep.subr.mxu0 %v591
        %726 = vmatpush1.msra.mxu0 %v590
        %727 = vmatprep.subr.mxu0 %v593
        %728 = vmatpush1.msra.mxu0 %v592
        %729 = vmatprep.subr.mxu0 %v595
        %730 = vmatpush1.msra.mxu0 %v594
        %731 = vmatprep.subr.mxu0 %v597
        %732 = vmatpush1.msra.mxu0 %v596
        %733 = vmatprep.subr.mxu0 %v599
        %734 = vmatpush1.msra.mxu0 %v598
        %735 = vmatprep.subr.mxu0 %v601
        %736 = vmatpush1.msra.mxu0 %v600
        %737 = vmatprep.subr.mxu0 %v603
        %738 = vmatpush1.msra.mxu0 %v602
        %739 = vmatprep.subr.mxu0 %v605
        %740 = vmatpush1.msra.mxu0 %v604
        %741 = vmatprep.subr.mxu0 %v607
        %742 = vmatpush1.msra.mxu0 %v606
        %743 = vmatprep.subr.mxu0 %v609
        %744 = vmatpush1.msra.mxu0 %v608
        %745 = vmatprep.subr.mxu0 %v611
        %746 = vmatpush1.msra.mxu0 %v610
        %747 = vmatprep.subr.mxu0 %v613
        %748 = vmatpush1.msra.mxu0 %v612
        %749 = vmatprep.subr.mxu0 %v615
        %750 = vmatpush1.msra.mxu0 %v614
        %751 = vmatprep.subr.mxu0 %v617
        %752 = vmatpush1.msra.mxu0 %v616
        %753 = vmatprep.subr.mxu0 %v619
        %754 = vmatpush1.msra.mxu0 %v618
        %755 = vmatprep.subr.mxu0 %v621
        %756 = vmatpush1.msra.mxu0 %v620
        %757 = vmatprep.subr.mxu0 %v623
        %758 = vmatpush1.msra.mxu0 %v622
        %759 = vmatprep.subr.mxu0 %v625
        %760 = vmatpush1.msra.mxu0 %v624
        %761 = vmatprep.subr.mxu0 %v627
        %762 = vmatpush1.msra.mxu0 %v626
        %763 = vmatprep.subr.mxu0 %v629
        %764 = vmatpush1.msra.mxu0 %v628
        %765 = vmatprep.subr.mxu0 %v631
        %766 = vmatpush1.msra.mxu0 %v630
        %767 = vmatprep.mubr.f32.mxu0 %v503
        %768 = vmatmul.mubr.f32.gmra.mrb[0].mxu0 %v494
        %v769 = vpop.f32.mrb[0].mxu0
        %v770 = vadd.f32 %v699, %v769
        %v771 = vpop.f32.mrb[0].mxu0
        %v772 = vadd.f32 %v701, %v771
        %773 = vdwg.mxu0
        %v774 = vsub.f32 0.0, %v770
        %v775 = vsub.f32 0.0, %v772
        %v776 = vmul.f32 %v774, 1.442695
        %v777 = vpow.pop %v776
        %v778 = vmul.f32 %v775, 1.442695
        %v779 = vpow.pop %v778
        %v780 = vadd.f32 %v777, 1.0
        %v781 = vadd.f32 %v779, 1.0
        %v782 = vrcp.pop %v780
        %v783 = vmul.f32 1.0, %v782
        %v784 = vrcp.pop %v781
        %v785 = vmul.f32 1.0, %v784
        %v786 = vlaneseq
        %v787 = vshrl.u32 %v786, 7
        %v788 = vsub.s32 0, %v787
        %v789 = vrot.slane %v783, %v788
        %v790 = vlaneseq
        %v791 = vshrl.u32 %v790, 7
        %v792 = vsub.s32 0, %v791
        %v793 = vrot.slane %v785, %v792
        %v794 = vmul.f32 %v458, %v789
        %v795 = vmul.f32 %v459, %v793
        %v796 = vmul.f32 %v460, %v789
        %v797 = vmul.f32 %v461, %v793
        %v798 = vmul.f32 %v462, %v789
        %v799 = vmul.f32 %v463, %v793
        %v800 = vmul.f32 %v464, %v789
        %v801 = vmul.f32 %v465, %v793
        %802 = vst [vmem:[%s259] sm:$0xff] %v794
        %803 = vst [vmem:[%s259 + $0x8] sm:$0xff] %v795
        %804 = vst [vmem:[%s259 + $0x10] sm:$0xff] %v796
        %805 = vst [vmem:[%s259 + $0x18] sm:$0xff] %v797
        %806 = vst [vmem:[%s259 + $0x20] sm:$0xff] %v798
        %807 = vst [vmem:[%s259 + $0x28] sm:$0xff] %v799
        %808 = vst [vmem:[%s259 + $0x30] sm:$0xff] %v800
        %809 = vst [vmem:[%s259 + $0x38] sm:$0xff] %v801
        %s810 = sand.u32 %s160, 1
        %s811 = scalar_lea.sflag [#allocation4], %s810
        %s812 = sand.u32 %s160, 1
        %s813 = smul.addr %s812, 64
        %s814 = scalar_lea.vmem [#allocation5], %s813
        // Predicated region
        $region49: #{tpu_custom_call.1} parent=43 // pred_check
          %p815 = pneg %p170
        $region50: #{tpu_custom_call.1} parent=43 // pred_check_branch
          %817 = sbr.rel (%p815) target = $region52
        $region51: #{tpu_custom_call.1} parent=43 // pred_region
          %s819 = ssub.s32 1024, 1024
          %820 = vsyncadd %s811, %s819
          %s821 = smul.addr %s21, 8
          %s822 = smul.addr %s821, 128
          %s823 = scalar_lea.hbm %s6, %s822
          %s824 = sshll.u32 %s814, 4
          %s825 = int_to_ptr.vmem [resolvable:$true] %s824
          %830 = dma.vmem_to_hbm [thread:$0]  %s825, 1024, %s823, %s811, 256, 256, 16
        $region52: #{tpu_custom_call.1} parent=43 // pred_fallthru
          _
      $region44: #{tpu_custom_call.1} parent=5 // pred_fallthru
        _
      %p831 = scmp.le.s32.totalorder 2, %s16
      // Predicated region
      $region53: #{tpu_custom_call.1} parent=5 // pred_check
        %p832 = pneg %p831
      $region54: #{tpu_custom_call.1} parent=5 // pred_check_branch
        %834 = sbr.rel (%p832) target = $region56
      $region55: #{tpu_custom_call.1} parent=5 // pred_region
        %s835 = ssub.s32 %s16, 2
        // Predicated region
        $region57: #{tpu_custom_call.1} parent=55 // pred_check
          %p836 = pneg %p176
        $region58: #{tpu_custom_call.1} parent=55 // pred_check_branch
          %838 = sbr.rel (%p836) target = $region60
        $region59: #{tpu_custom_call.1} parent=55 // pred_region
          %s839 = sand.u32 %s161, 1
          %s840 = scalar_lea.sflag [#allocation4], %s839
          %s841 = sand.u32 %s161, 1
          %s842 = smul.addr %s841, 64
          %s843 = scalar_lea.vmem [#allocation5], %s842
          %844 = dma.done %s840, 1024
        $region60: #{tpu_custom_call.1} parent=55 // pred_fallthru
          _
      $region56: #{tpu_custom_call.1} parent=5 // pred_fallthru
        _
    $region6: #{tpu_custom_call.1} parent=1 // loop_footer
      %s20 = sadd.s32 1, %s16
    $region7: #{tpu_custom_call.1} parent=1 // loop_footer_branch
      %15 = sbr.rel target = $region3
    $region8: #{tpu_custom_call.1} parent=1 // loop_exit
      _
    %845 = vsyncpa [#allocation3], 1
    %s846 = scalar_lea.sflag [#allocation3], 1
    %847 = vsyncpa %s846, 1
    %848 = vsyncpa [#allocation4], 1
    %s849 = scalar_lea.sflag [#allocation4], 1
    %850 = vsyncpa %s849, 1

</llo_original>
